<compile_context>
chip_gen: v7x
topology: tpu7x:2x2x1
jax: 0.10.0
libtpu: 0.0.40
codegen_flags: <defaults>
</compile_context>

<pallas_src>
import functools
import math

import jax
import jax.numpy as jnp
from jax import lax
from jax.experimental import pallas as pl
from jax.experimental.pallas import tpu as pltpu


# ----------------------------------------------------------------------------------
# VMEM budget (generation aware: v7x = 64 MiB per TC is the binding constraint)
# ----------------------------------------------------------------------------------

def _query_vmem_capacity_bytes():
    try:
        info = pltpu.get_tpu_info()
        cap = int(getattr(info, "vmem_capacity_bytes", 0) or 0)
        if cap > 0:
            return cap
    except Exception:
        pass
    return 64 << 20  # conservative default (v7x per-TensorCore VMEM)


_VMEM_CAP = _query_vmem_capacity_bytes()
_VMEM_LIMIT = int(min(_VMEM_CAP * 3 // 4, 100 << 20))
_TILE_BUDGET = int(min(_VMEM_LIMIT // 3, 16 << 20))


def _pick_row_tile(H, W, cin_total, tn, in_bytes, out_bytes):
    """Largest row tile whose double-buffered streams + in-VMEM im2col fit the budget."""
    per_row = ((W + 2) * cin_total * in_bytes * 2   # input halo rows (x2 buffers)
               + W * 9 * cin_total * 2              # bf16 patch slab (in-VMEM im2col)
               + W * tn * 4                         # f32 accumulator
               + W * tn * out_bytes * 2)            # output tile (x2 buffers)
    fixed = 9 * cin_total * tn * 2 * 2 + (2 << 20)  # weight tile (x2 buffers) + slack
    th = int(max(1, (_TILE_BUDGET - fixed) // max(per_row, 1)))
    th = max(1, min(th, H))
    while th > 1 and H % th:
        th -= 1
    return th


# ----------------------------------------------------------------------------------
# Pallas conv3x3 kernel (9 taps folded into one K = 9*Cin MXU matmul)
# ----------------------------------------------------------------------------------

def _make_conv_kernel(n_inputs, n_ep, row_tile, out_w, neg_slope, epilogue, t):
    def kernel(*refs):
        in_refs = refs[: 3 * n_inputs]
        w_ref = refs[3 * n_inputs]
        b_ref = refs[3 * n_inputs + 1]
        ep_refs = refs[3 * n_inputs + 2: 3 * n_inputs + 2 + n_ep]
        o_ref = refs[-1]

        # Build the (row_tile + 2, W + 2, Cin_total) halo window in VMEM.
        wins = []
        for m in range(n_inputs):
            body = in_refs[3 * m][0]        # (row_tile, W+2, Cin_m)
            halo0 = in_refs[3 * m + 1][0]   # (1, W+2, Cin_m)
            halo1 = in_refs[3 * m + 2][0]   # (1, W+2, Cin_m)
            wins.append(jnp.concatenate([body, halo0, halo1], axis=0))
        win = wins[0] if n_inputs == 1 else jnp.concatenate(wins, axis=-1)
        win = win.astype(jnp.bfloat16)

        # In-VMEM im2col: 9 shifted taps concatenated along channels -> K = 9*Cin.
        taps = [win[dy:dy + row_tile, dx:dx + out_w, :]
                for dy in range(3) for dx in range(3)]
        patches = jnp.concatenate(taps, axis=-1)            # (row_tile, W, 9*Cin)
        k = patches.shape[-1]
        patches = patches.reshape(row_tile * out_w, k)

        # One MXU matmul, f32 accumulation; bias + LeakyReLU in f32.
        acc = jnp.dot(patches, w_ref[...], preferred_element_type=jnp.float32)
        acc = acc + b_ref[...]
        if neg_slope is not None:
            acc = jnp.where(acc >= 0, acc, acc * neg_slope)

        if epilogue is None:
            out = acc
        elif epilogue == "blend":
            # sigmoid(mask) weighted blend of the two warped frames (fused epilogue).
            xt1 = ep_refs[0][0].reshape(row_tile * out_w, -1).astype(jnp.float32)
            xt2 = ep_refs[1][0].reshape(row_tile * out_w, -1).astype(jnp.float32)
            mask = jax.nn.sigmoid(acc)
            w1 = (1.0 - t) * mask[:, 0:1]
            w2 = t * mask[:, 1:2]
            out = (w1 * xt1 + w2 * xt2) / (w1 + w2 + 1e-8)
        elif epilogue == "residual_clamp":
            base = ep_refs[0][0].reshape(row_tile * out_w, -1).astype(jnp.float32)
            out = jnp.clip(acc + base, 0.0, 1.0)
        else:
            raise ValueError(epilogue)

        o_ref[...] = out.reshape(1, row_tile, out_w, out.shape[-1]).astype(o_ref.dtype)

    return kernel


def conv3x3(inputs, w, b, *, neg_slope=None, epilogue=None, epilogue_args=(),
            t=0.5, out_dtype=jnp.bfloat16, row_tile=None):
    """3x3 conv, padding=1, stride=1, tiled over (batch, rows, cout).

    inputs : NHWC array or list of NHWC arrays (treated as channel-concatenated,
             so the up-path skip concat never hits HBM).
    w      : (3, 3, Cin_total, Cout)   b: (Cout,)
    epilogue: None | 'blend' (xt1, xt2) | 'residual_clamp' (base)
    """
    if not isinstance(inputs, (list, tuple)):
        inputs = [inputs]
    inputs = list(inputs)
    N, H, W, _ = inputs[0].shape
    cins = [int(x.shape[-1]) for x in inputs]
    cin_total = sum(cins)
    cout = int(w.shape[-1])
    assert w.shape == (3, 3, cin_total, cout)

    # Cout tile: lane-dense multiples of 128/256 where possible.
    if epilogue is None:
        if cout % 256 == 0:
            tn = 256
        elif cout % 128 == 0:
            tn = 128
        else:
            tn = cout
        out_channels = cout
    else:
        tn = cout
        out_channels = int(epilogue_args[0].shape[-1])
    n_ct = cout // tn
    assert epilogue is None or n_ct == 1

    in_bytes = max(jnp.dtype(x.dtype).itemsize for x in inputs)
    out_bytes = jnp.dtype(out_dtype).itemsize
    th = row_tile if row_tile is not None else _pick_row_tile(
        H, W, cin_total, tn, in_bytes, out_bytes)
    th = max(1, min(th, H))
    assert H % th == 0
    n_rb = H // th
    wp = W + 2
    hp = -((H + 2) // -th) * th        # padded rows, rounded up to a tile multiple

    w9 = w.reshape(9 * cin_total, cout).astype(jnp.bfloat16)
    b2 = b.reshape(1, cout).astype(jnp.float32)

    in_specs = []
    call_args = []
    for x, cin in zip(inputs, cins):
        xp = jnp.pad(x, ((0, 0), (1, hp - H - 1), (1, 1), (0, 0)))
        # Row block + two single-row halo blocks (minimal overlapping reads).
        in_specs.append(pl.BlockSpec((1, th, wp, cin),
                                     lambda n, i, j: (n, i, 0, 0)))
        in_specs.append(pl.BlockSpec((1, 1, wp, cin),
                                     lambda n, i, j, th=th: (n, i * th + th, 0, 0)))
        in_specs.append(pl.BlockSpec((1, 1, wp, cin),
                                     lambda n, i, j, th=th: (n, i * th + th + 1, 0, 0)))
        call_args += [xp, xp, xp]

    in_specs.append(pl.BlockSpec((9 * cin_total, tn), lambda n, i, j: (0, j)))
    in_specs.append(pl.BlockSpec((1, tn), lambda n, i, j: (0, j)))
    call_args += [w9, b2]

    for ep in epilogue_args:
        in_specs.append(pl.BlockSpec((1, th, W, int(ep.shape[-1])),
                                     lambda n, i, j: (n, i, 0, 0)))
        call_args.append(ep)

    out_blk_c = tn if epilogue is None else out_channels
    out_spec = pl.BlockSpec((1, th, W, out_blk_c), lambda n, i, j: (n, i, 0, j))

    kernel = _make_conv_kernel(len(inputs), len(epilogue_args), th, W,
                               neg_slope, epilogue, float(t))
    return pl.pallas_call(
        kernel,
        out_shape=jax.ShapeDtypeStruct((N, H, W, out_channels), out_dtype),
        grid=(N, n_rb, n_ct),
        in_specs=in_specs,
        out_specs=out_spec,
        compiler_params=pltpu.CompilerParams(
            dimension_semantics=("parallel", "parallel", "parallel"),
            vmem_limit_bytes=_VMEM_LIMIT),
    )(*call_args)


# ----------------------------------------------------------------------------------
# Plain-JAX glue: pooling, bilinear upsample, grid_sample warp, crop
# ----------------------------------------------------------------------------------

def avg_pool2(x):
    N, H, W, C = x.shape
    x4 = x.reshape(N, H // 2, 2, W // 2, 2, C).astype(jnp.float32)
    return x4.mean(axis=(2, 4)).astype(x.dtype)


def upsample_bilinear_x2(x):
    """nn.Upsample(mode='bilinear', scale_factor=2), align_corners=False semantics."""
    N, H, W, C = x.shape

    def src_idx(out_size, in_size):
        src = (jnp.arange(out_size, dtype=jnp.float32) + 0.5) * (in_size / out_size) - 0.5
        src = jnp.maximum(src, 0.0)
        i0 = jnp.minimum(jnp.floor(src).astype(jnp.int32), in_size - 1)
        i1 = jnp.minimum(i0 + 1, in_size - 1)
        frac = src - i0.astype(jnp.float32)
        return i0, i1, frac

    y0, y1, fy = src_idx(2 * H, H)
    x0, x1, fx = src_idx(2 * W, W)
    top = x[:, y0, :, :]
    bot = x[:, y1, :, :]
    rows = top * (1.0 - fy)[None, :, None, None] + bot * fy[None, :, None, None]
    left = rows[:, :, x0, :]
    right = rows[:, :, x1, :]
    out = left * (1.0 - fx)[None, None, :, None] + right * fx[None, None, :, None]
    return out.astype(x.dtype)


def warp(img, flow):
    """F.grid_sample bilinear, padding_mode='zeros', align_corners=False.

    img:  [N,H,W,C]; flow: [N,H,W,2] (u = x-disp, v = y-disp).
    """
    # TODO(synk): move the 4-corner gather into a Pallas kernel (data-dependent DMA /
    # in-VMEM take); currently XLA gather.
    N, H, W, C = img.shape
    gx = jnp.arange(W, dtype=jnp.float32).reshape(1, 1, W)
    gy = jnp.arange(H, dtype=jnp.float32).reshape(1, H, 1)
    ix = gx + flow[..., 0] - 0.5
    iy = gy + flow[..., 1] - 0.5

    x0f = jnp.floor(ix)
    y0f = jnp.floor(iy)
    x1f = x0f + 1.0
    y1f = y0f + 1.0
    wx1 = ix - x0f
    wx0 = 1.0 - wx1
    wy1 = iy - y0f
    wy0 = 1.0 - wy1

    img_flat = img.reshape(N, H * W, C)

    def corner(xc, yc, wgt):
        valid = (xc >= 0) & (xc <= W - 1) & (yc >= 0) & (yc <= H - 1)
        xi = jnp.clip(xc, 0, W - 1).astype(jnp.int32)
        yi = jnp.clip(yc, 0, H - 1).astype(jnp.int32)
        idx = (yi * W + xi).reshape(N, H * W, 1)
        vals = jnp.take_along_axis(img_flat, jnp.broadcast_to(idx, (N, H * W, C)), axis=1)
        vals = vals.reshape(N, H, W, C)
        return vals * (wgt * valid.astype(jnp.float32))[..., None]

    return (corner(x0f, y0f, wx0 * wy0) + corner(x1f, y0f, wx1 * wy0)
            + corner(x0f, y1f, wx0 * wy1) + corner(x1f, y1f, wx1 * wy1))


def center_crop(layer, th, tw):
    _, lh, lw, _ = layer.shape
    dy = (lh - th) // 2
    dx = (lw - tw) // 2
    return layer[:, dy:dy + th, dx:dx + tw, :]


# ----------------------------------------------------------------------------------
# UNet (parameters + forward)
# ----------------------------------------------------------------------------------

def _init_conv(key, cin, cout):
    kw, kb = jax.random.split(key)
    fan_in = cin * 9
    w = jax.random.normal(kw, (3, 3, cin, cout), jnp.float32) * (1.0 / math.sqrt(fan_in))
    b = jax.random.normal(kb, (cout,), jnp.float32) * 0.01
    return {'w': w.astype(jnp.bfloat16), 'b': b}   # bf16 weights, f32 bias


def init_unet(key, in_channels, n_classes, depth, wf=5):
    keys = jax.random.split(key, 4 * depth + 8)
    ki = 0
    prev = in_channels
    down = []
    for i in range(depth):
        out = 2 ** (wf + i)
        c1 = _init_conv(keys[ki], prev, out); ki += 1
        c2 = _init_conv(keys[ki], out, out); ki += 1
        down.append((c1, c2))
        prev = out
    mid = _init_conv(keys[ki], prev, prev); ki += 1
    up = []
    for i in reversed(range(depth - 1)):
        out = 2 ** (wf + i)
        upconv = _init_conv(keys[ki], prev, out); ki += 1   # Upsample + conv: prev -> out
        c1 = _init_conv(keys[ki], prev, out); ki += 1       # after skip: prev(=2*out) -> out
        c2 = _init_conv(keys[ki], out, out); ki += 1
        up.append((upconv, c1, c2))
        prev = out
    last = _init_conv(keys[ki], prev, n_classes); ki += 1
    return {'down': down, 'mid': mid, 'up': up, 'last': last}


def unet_forward(p, x, *, last_epilogue=None, epilogue_args=(), t=0.5,
                 last_out_dtype=jnp.float32):
    depth = len(p['down'])
    blocks = []
    for i in range(depth):
        c1, c2 = p['down'][i]
        # TODO(synk): fuse the two convs of each level into one kernel with the
        # intermediate held in VMEM scratch (halo of 1 row).
        x = conv3x3(x, c1['w'], c1['b'], neg_slope=0.1)
        x = conv3x3(x, c2['w'], c2['b'], neg_slope=0.1)
        if i != depth - 1:
            blocks.append(x)
            x = avg_pool2(x)
    x = conv3x3(x, p['mid']['w'], p['mid']['b'], neg_slope=0.1)   # midconv + leaky(0.1)
    for i, (upconv, c1, c2) in enumerate(p['up']):
        up = upsample_bilinear_x2(x)
        up = conv3x3(up, upconv['w'], upconv['b'], neg_slope=None)
        bridge = center_crop(blocks[-i - 1], up.shape[1], up.shape[2])
        # skip concat done in VMEM inside the conv kernel (no HBM concat)
        x = conv3x3([up, bridge], c1['w'], c1['b'], neg_slope=0.1)
        x = conv3x3(x, c2['w'], c2['b'], neg_slope=0.1)
    return conv3x3(x, p['last']['w'], p['last']['b'], neg_slope=None,
                   epilogue=last_epilogue, epilogue_args=epilogue_args, t=t,
                   out_dtype=last_out_dtype)


# ----------------------------------------------------------------------------------
# Net (RRIN)
# ----------------------------------------------------------------------------------

def init_net_params(key):
    kf, kr, km, kfin = jax.random.split(key, 4)
    return {
        'flow':   init_unet(kf, 6, 4, 5),    # Flow_L      = UNet(6, 4, 5)
        'refine': init_unet(kr, 10, 4, 4),   # refine_flow = UNet(10, 4, 4)
        'mask':   init_unet(km, 16, 2, 4),   # Mask        = UNet(16, 2, 4)
        'final':  init_unet(kfin, 9, 3, 4),  # final       = UNet(9, 3, 4)
    }


def net_forward(params, x0, x1, t=0.5):
    # x0, x1: [N,H,W,3] NHWC float32
    x = jnp.concatenate([x0, x1], axis=-1)                        # 6 channels
    flow = unet_forward(params['flow'], x, last_out_dtype=jnp.float32)   # 4 channels
    flow_0_1 = flow[..., 0:2]
    flow_1_0 = flow[..., 2:4]
    flow_t_0 = -(1.0 - t) * t * flow_0_1 + t * t * flow_1_0
    flow_t_1 = (1.0 - t) * (1.0 - t) * flow_0_1 - t * (1.0 - t) * flow_1_0

    flow_t_in = jnp.concatenate([flow_t_0, flow_t_1, x], axis=-1)  # 10 channels
    flow_t = unet_forward(params['refine'], flow_t_in, last_out_dtype=jnp.float32)
    flow_t_0 = flow_t_0 + flow_t[..., 0:2]
    flow_t_1 = flow_t_1 + flow_t[..., 2:4]

    xt1 = warp(x0, flow_t_0)
    xt2 = warp(x1, flow_t_1)

    temp = jnp.concatenate([flow_t_0, flow_t_1, x, xt1, xt2], axis=-1)    # 16 channels
    # mask UNet last conv has the sigmoid-mask blend fused into its epilogue
    output = unet_forward(params['mask'], temp, last_epilogue='blend',
                          epilogue_args=(xt1, xt2), t=t,
                          last_out_dtype=jnp.float32)                     # 3 channels

    compose = jnp.concatenate([x0, x1, output], axis=-1)                  # 9 channels
    # final UNet last conv has the residual-add + clamp fused into its epilogue
    final = unet_forward(params['final'], compose, last_epilogue='residual_clamp',
                         epilogue_args=(output,), last_out_dtype=jnp.float32)
    return final


# ----------------------------------------------------------------------------------
# Main
# ----------------------------------------------------------------------------------

if __name__ == "__main__":
    key = jax.random.PRNGKey(0)
    k_in0, k_in1, k_par, k_t1, k_t2, k_t3 = jax.random.split(key, 6)

    N, C, H, W = 2, 3, 16, 16
    input0_nchw = jax.random.uniform(k_in0, (N, C, H, W), jnp.float32)
    input1_nchw = jax.random.uniform(k_in1, (N, C, H, W), jnp.float32)

    params = init_net_params(k_par)

    # --- standalone check of the tiled halo conv vs XLA conv (exercises n_rb > 1) ---
    xt = jax.random.normal(k_t1, (1, 16, 16, 6), jnp.float32)
    wt = jax.random.normal(k_t2, (3, 3, 6, 8), jnp.float32) * 0.1
    bt = jax.random.normal(k_t3, (8,), jnp.float32) * 0.01
    test_fn = jax.jit(lambda a, ww, bb: conv3x3(a, ww, bb, neg_slope=0.1,
                                                out_dtype=jnp.float32, row_tile=4))
    got = test_fn(xt, wt, bt)
    xr = xt.astype(jnp.bfloat16).astype(jnp.float32)
    wr = wt.astype(jnp.bfloat16).astype(jnp.float32)
    ref = lax.conv_general_dilated(xr, wr, (1, 1), "SAME",
                                   dimension_numbers=("NHWC", "HWIO", "NHWC"))
    ref = ref + bt.reshape(1, 1, 1, 8)
    ref = jnp.where(ref >= 0, ref, ref * 0.1)
    assert float(jnp.max(jnp.abs(got - ref))) < 1e-3

    # --- full RRIN forward (NCHW -> NHWC at the boundary) ---
    x0 = jnp.transpose(input0_nchw, (0, 2, 3, 1))
    x1 = jnp.transpose(input1_nchw, (0, 2, 3, 1))

    fwd = jax.jit(net_forward)
    out_nhwc = fwd(params, x0, x1)
    out_nchw = jnp.transpose(out_nhwc, (0, 3, 1, 2))
    jax.block_until_ready(out_nchw)

    assert out_nchw.shape == (N, C, H, W)
    assert bool(jnp.all(jnp.isfinite(out_nchw)))
    assert bool(jnp.all((out_nchw >= 0.0) & (out_nchw <= 1.0)))
    print("KERNEL_OK")
</pallas_src>

<mosaic_0001>
module attributes {stable_mosaic.version = 11 : i64} {
  func.func @kernel(%arg0: i32, %arg1: i32, %arg2: i32, %arg3: memref<1x4x18x6xf32, #tpu.memory_space<vmem>>, %arg4: memref<1x1x18x6xf32, #tpu.memory_space<vmem>>, %arg5: memref<1x1x18x6xf32, #tpu.memory_space<vmem>>, %arg6: memref<54x8xbf16, #tpu.memory_space<vmem>>, %arg7: memref<1x8xf32, #tpu.memory_space<vmem>>, %arg8: memref<1x4x16x8xf32, #tpu.memory_space<vmem>>) attributes {dimension_semantics = [#tpu.dimension_semantics<parallel>, #tpu.dimension_semantics<parallel>, #tpu.dimension_semantics<parallel>], iteration_bounds = array<i64: 1, 4, 1>, scalar_prefetch = 0 : i64, scratch_operands = 0 : i64, tpu.core_type = #tpu.core_type<tc>, window_params = [{transform_indices = @transform_0, window_bounds = array<i64: 1, 4, 18, 6>}, {transform_indices = @transform_1, window_bounds = array<i64: 1, 1, 18, 6>}, {transform_indices = @transform_2, window_bounds = array<i64: 1, 1, 18, 6>}, {transform_indices = @transform_3, window_bounds = array<i64: 54, 8>}, {transform_indices = @transform_4, window_bounds = array<i64: 1, 8>}, {transform_indices = @transform_5, window_bounds = array<i64: 1, 4, 16, 8>}]} {
    %c0 = arith.constant 0 : index
    %c0_0 = arith.constant 0 : index
    %c0_1 = arith.constant 0 : index
    %c0_2 = arith.constant 0 : index
    %0 = vector.load %arg3[%c0, %c0_0, %c0_1, %c0_2] : memref<1x4x18x6xf32, #tpu.memory_space<vmem>>, vector<1x4x18x6xf32>
    %1 = vector.shape_cast %0 : vector<1x4x18x6xf32> to vector<4x18x6xf32>
    %c0_3 = arith.constant 0 : index
    %c0_4 = arith.constant 0 : index
    %c0_5 = arith.constant 0 : index
    %c0_6 = arith.constant 0 : index
    %2 = vector.load %arg4[%c0_3, %c0_4, %c0_5, %c0_6] : memref<1x1x18x6xf32, #tpu.memory_space<vmem>>, vector<1x1x18x6xf32>
    %3 = vector.shape_cast %2 : vector<1x1x18x6xf32> to vector<1x18x6xf32>
    %c0_7 = arith.constant 0 : index
    %c0_8 = arith.constant 0 : index
    %c0_9 = arith.constant 0 : index
    %c0_10 = arith.constant 0 : index
    %4 = vector.load %arg5[%c0_7, %c0_8, %c0_9, %c0_10] : memref<1x1x18x6xf32, #tpu.memory_space<vmem>>, vector<1x1x18x6xf32>
    %5 = vector.shape_cast %4 : vector<1x1x18x6xf32> to vector<1x18x6xf32>
    %6 = tpu.concatenate %1, %3, %5 in 0 : vector<4x18x6xf32>, vector<1x18x6xf32>, vector<1x18x6xf32> -> vector<6x18x6xf32>
    %7 = arith.truncf %6 : vector<6x18x6xf32> to vector<6x18x6xbf16>
    %8 = vector.extract_strided_slice %7 {offsets = [0, 0, 0], sizes = [4, 16, 6], strides = [1, 1, 1]} : vector<6x18x6xbf16> to vector<4x16x6xbf16>
    %9 = vector.extract_strided_slice %7 {offsets = [0, 1, 0], sizes = [4, 16, 6], strides = [1, 1, 1]} : vector<6x18x6xbf16> to vector<4x16x6xbf16>
    %10 = vector.extract_strided_slice %7 {offsets = [0, 2, 0], sizes = [4, 16, 6], strides = [1, 1, 1]} : vector<6x18x6xbf16> to vector<4x16x6xbf16>
    %11 = vector.extract_strided_slice %7 {offsets = [1, 0, 0], sizes = [4, 16, 6], strides = [1, 1, 1]} : vector<6x18x6xbf16> to vector<4x16x6xbf16>
    %12 = vector.extract_strided_slice %7 {offsets = [1, 1, 0], sizes = [4, 16, 6], strides = [1, 1, 1]} : vector<6x18x6xbf16> to vector<4x16x6xbf16>
    %13 = vector.extract_strided_slice %7 {offsets = [1, 2, 0], sizes = [4, 16, 6], strides = [1, 1, 1]} : vector<6x18x6xbf16> to vector<4x16x6xbf16>
    %14 = vector.extract_strided_slice %7 {offsets = [2, 0, 0], sizes = [4, 16, 6], strides = [1, 1, 1]} : vector<6x18x6xbf16> to vector<4x16x6xbf16>
    %15 = vector.extract_strided_slice %7 {offsets = [2, 1, 0], sizes = [4, 16, 6], strides = [1, 1, 1]} : vector<6x18x6xbf16> to vector<4x16x6xbf16>
    %16 = vector.extract_strided_slice %7 {offsets = [2, 2, 0], sizes = [4, 16, 6], strides = [1, 1, 1]} : vector<6x18x6xbf16> to vector<4x16x6xbf16>
    %17 = tpu.concatenate %8, %9, %10, %11, %12, %13, %14, %15, %16 in 2 : vector<4x16x6xbf16>, vector<4x16x6xbf16>, vector<4x16x6xbf16>, vector<4x16x6xbf16>, vector<4x16x6xbf16>, vector<4x16x6xbf16>, vector<4x16x6xbf16>, vector<4x16x6xbf16>, vector<4x16x6xbf16> -> vector<4x16x54xbf16>
    %18 = vector.shape_cast %17 : vector<4x16x54xbf16> to vector<64x54xbf16>
    %c0_11 = arith.constant 0 : index
    %c0_12 = arith.constant 0 : index
    %19 = vector.load %arg6[%c0_11, %c0_12] : memref<54x8xbf16, #tpu.memory_space<vmem>>, vector<54x8xbf16>
    %cst = arith.constant dense<0.000000e+00> : vector<64x8xf32>
    %20 = tpu.matmul %18, %19, %cst {dimension_numbers = #tpu.dot_dimension_numbers<[1], [0], [0], [1], [0, 0, 1, 1], [], []>} : vector<64x54xbf16>, vector<54x8xbf16>, vector<64x8xf32> -> vector<64x8xf32>
    %c0_13 = arith.constant 0 : index
    %c0_14 = arith.constant 0 : index
    %21 = vector.load %arg7[%c0_13, %c0_14] : memref<1x8xf32, #tpu.memory_space<vmem>>, vector<1x8xf32>
    %22 = vector.broadcast %21 : vector<1x8xf32> to vector<64x8xf32>
    %23 = arith.addf %20, %22 : vector<64x8xf32>
    %cst_15 = arith.constant 0.000000e+00 : f32
    %24 = vector.broadcast %cst_15 : f32 to vector<64x8xf32>
    %25 = arith.cmpf oge, %23, %24 : vector<64x8xf32>
    %cst_16 = arith.constant 1.000000e-01 : f32
    %26 = vector.broadcast %cst_16 : f32 to vector<64x8xf32>
    %27 = arith.mulf %23, %26 : vector<64x8xf32>
    %28 = arith.select %25, %23, %27 : vector<64x8xi1>, vector<64x8xf32>
    %29 = vector.shape_cast %28 : vector<64x8xf32> to vector<1x4x16x8xf32>
    %c0_17 = arith.constant 0 : index
    %c0_18 = arith.constant 0 : index
    %c0_19 = arith.constant 0 : index
    %c0_20 = arith.constant 0 : index
    %30 = vector.load %arg8[%c0_17, %c0_18, %c0_19, %c0_20] : memref<1x4x16x8xf32, #tpu.memory_space<vmem>>, vector<1x4x16x8xf32>
    tpu.vector_store %arg8[%c0_17, %c0_18, %c0_19, %c0_20], %29 {strides = array<i32>} : memref<1x4x16x8xf32, #tpu.memory_space<vmem>>, vector<1x4x16x8xf32>,
    return
  }
  func.func @transform_0(%arg0: i32, %arg1: i32, %arg2: i32) -> (i32, i32, i32, i32) {
    %c0_i32 = arith.constant 0 : i32
    %c0_i32_0 = arith.constant 0 : i32
    %c0_i32_1 = arith.constant 0 : i32
    return %arg0, %arg1, %c0_i32, %c0_i32_0 : i32, i32, i32, i32
  }
  func.func @transform_1(%arg0: i32, %arg1: i32, %arg2: i32) -> (i32, i32, i32, i32) {
    %c4_i32 = arith.constant 4 : i32
    %0 = arith.muli %arg1, %c4_i32 : i32
    %c4_i32_0 = arith.constant 4 : i32
    %1 = arith.addi %0, %c4_i32_0 : i32
    %c0_i32 = arith.constant 0 : i32
    %c0_i32_1 = arith.constant 0 : i32
    %c0_i32_2 = arith.constant 0 : i32
    return %arg0, %1, %c0_i32, %c0_i32_1 : i32, i32, i32, i32
  }
  func.func @transform_2(%arg0: i32, %arg1: i32, %arg2: i32) -> (i32, i32, i32, i32) {
    %c4_i32 = arith.constant 4 : i32
    %0 = arith.muli %arg1, %c4_i32 : i32
    %c4_i32_0 = arith.constant 4 : i32
    %1 = arith.addi %0, %c4_i32_0 : i32
    %c1_i32 = arith.constant 1 : i32
    %2 = arith.addi %1, %c1_i32 : i32
    %c0_i32 = arith.constant 0 : i32
    %c0_i32_1 = arith.constant 0 : i32
    %c0_i32_2 = arith.constant 0 : i32
    return %arg0, %2, %c0_i32, %c0_i32_1 : i32, i32, i32, i32
  }
  func.func @transform_3(%arg0: i32, %arg1: i32, %arg2: i32) -> (i32, i32) {
    %c0_i32 = arith.constant 0 : i32
    %c0_i32_0 = arith.constant 0 : i32
    return %c0_i32, %arg2 : i32, i32
  }
  func.func @transform_4(%arg0: i32, %arg1: i32, %arg2: i32) -> (i32, i32) {
    %c0_i32 = arith.constant 0 : i32
    %c0_i32_0 = arith.constant 0 : i32
    return %c0_i32, %arg2 : i32, i32
  }
  func.func @transform_5(%arg0: i32, %arg1: i32, %arg2: i32) -> (i32, i32, i32, i32) {
    %c0_i32 = arith.constant 0 : i32
    %c0_i32_0 = arith.constant 0 : i32
    return %arg0, %arg1, %c0_i32, %arg2 : i32, i32, i32, i32
  }
}

</mosaic_0001>

<llo_original>
// kernel: _lambda_.1
$region0: #{_lambda_.1}
  #allocation0 [shape = 'u32[]', space=smem, size = 0x4, offset = 0x4, fixed_abs, tag = 'smem constant byte address 0x4 - core index']
  #allocation1 [shape = 'u32[144,128]{1,0:T(1,128)}', space=vmem, size = 0x12000, scoped, tag = 'internal scratch']
  %s0 = inlined_call_operand.vmem [shape: f32[1,20,18,6], index: 0, kind: input, shape index: {}, may-alias: {0,1,2}]
  %s1 = inlined_call_operand.vmem [shape: f32[1,20,18,6], index: 1, kind: input, shape index: {}, may-alias: {0,1,2}]
  %s2 = inlined_call_operand.vmem [shape: f32[1,20,18,6], index: 2, kind: input, shape index: {}, may-alias: {0,1,2}]
  %s3 = inlined_call_operand.vmem [shape: bf16[54,8], index: 3, kind: input, shape index: {}]
  %s4 = inlined_call_operand.vmem [shape: f32[1,8], index: 4, kind: input, shape index: {}]
  %s5 = inlined_call_operand.vmem [shape: f32[1,16,16,8], index: 5, kind: output, shape index: {}]
  %s6 = sld [smem:[#allocation0]]
  $region53: #{_lambda_.1} parent=0
    _
  %s8 = ssub.s32 1, %s6
  %s9 = scalar_select 0, %s8, %s6
  loop: start=0, step=1, limit=6
  $region2: #{_lambda_.1} parent=0 // loop_pre_header
    _
  $region3: #{_lambda_.1} parent=0 // loop_header
    %s11 = sphi 0, %s15
    %p12 = scmp.ge.s32.totalorder %s11, 6
    %s18 = sphi 0, %s37
    %s19 = sphi 0, %s33
    %s20 = sphi 0, %s29
    %s21 = sphi 0, %s18
    %s22 = sphi 0, %s19
    %s23 = sphi 0, %s20
    %s24 = sphi 0, %s21
    %s25 = sphi 0, %s22
    %s26 = sphi 0, %s23
    %s42 = sphi 0, %s44
    %s45 = sphi 0, %s42
    %s46 = sphi 0, %s45
    %s62 = sphi 0, %s46
    %s74 = sphi 0, %s76
    %s77 = sphi 0, %s74
    %s78 = sphi 0, %s77
    %s94 = sphi 0, %s78
    %s106 = sphi 0, %s108
    %s109 = sphi 0, %s106
    %s110 = sphi 0, %s109
    %s126 = sphi 0, %s110
    %s132 = sphi 0, %s134
    %s135 = sphi 0, %s132
    %s136 = sphi 0, %s135
    %s152 = sphi 0, %s136
    %s158 = sphi 0, %s160
    %s161 = sphi 0, %s158
    %s162 = sphi 0, %s161
    %s178 = sphi 0, %s162
    %s188 = sphi 0, %s190
    %s191 = sphi 0, %s188
    %s192 = sphi 0, %s191
    %s208 = sphi 0, %s192
  $region4: #{_lambda_.1} parent=0 // loop_header_branch
    %14 = sbr.rel (%p12) target = $region8
  $region5: #{_lambda_.1} parent=0 // loop_body
    %s16 = ssub.s32 %s11, 1
    %s17 = ssub.s32 %s11, 2
    %s27 = sadd.s32 1, %s20
    %p28 = scmp.ge.s32.totalorder %s27, 1
    %s29 = scalar_select %p28, 0, %s27
    %s30 = sadd.s32 1, %s19
    %s31 = scalar_select %p28, %s30, %s19
    %p32 = scmp.ge.s32.totalorder %s31, 4
    %s33 = scalar_select %p32, 0, %s31
    %s34 = sadd.s32 1, %s18
    %s35 = scalar_select %p32, %s34, %s18
    %p36 = scmp.ge.s32.totalorder %s35, 1
    %s37 = scalar_select %p36, 0, %s35
    %s38 = ssub.s32 %s18, %s37
    %s39 = ssub.s32 %s19, %s33
    %s40 = sor.u32 %s38, %s39
    %p41 = scmp.eq.s32.totalorder %s40, 0
    %s43 = sadd.s32 %s42, 1
    %s44 = scalar_select %p41, %s42, %s43
    %p47 = pneg %p41
    %p48 = scmp.eq.s32.totalorder %s11, 3
    %p49 = por %p47, %p48
    %p50 = scmp.ne.s32.totalorder %s42, %s45
    %p51 = scmp.eq.s32.totalorder %s11, 0
    %p52 = por %p50, %p51
    %p53 = scmp.ne.s32.totalorder %s42, %s45
    %p54 = scmp.eq.s32.totalorder %s16, 3
    %p55 = por %p53, %p54
    %p56 = scmp.ne.s32.totalorder %s45, %s46
    %p57 = scmp.eq.s32.totalorder %s16, 0
    %p58 = por %p56, %p57
    %p59 = scmp.ne.s32.totalorder %s45, %s46
    %p60 = scmp.eq.s32.totalorder %s17, 3
    %p61 = por %p59, %p60
    %p63 = scmp.ne.s32.totalorder %s46, %s62
    %p64 = scmp.eq.s32.totalorder %s17, 0
    %p65 = por %p63, %p64
    %s66 = smul.u32 %s19, 4
    %s67 = sadd.s32 %s66, 4
    %s68 = smul.u32 %s33, 4
    %s69 = sadd.s32 %s68, 4
    %s70 = ssub.s32 %s18, %s37
    %s71 = ssub.s32 %s67, %s69
    %s72 = sor.u32 %s70, %s71
    %p73 = scmp.eq.s32.totalorder %s72, 0
    %s75 = sadd.s32 %s74, 1
    %s76 = scalar_select %p73, %s74, %s75
    %p79 = pneg %p73
    %p80 = scmp.eq.s32.totalorder %s11, 3
    %p81 = por %p79, %p80
    %p82 = scmp.ne.s32.totalorder %s74, %s77
    %p83 = scmp.eq.s32.totalorder %s11, 0
    %p84 = por %p82, %p83
    %p85 = scmp.ne.s32.totalorder %s74, %s77
    %p86 = scmp.eq.s32.totalorder %s16, 3
    %p87 = por %p85, %p86
    %p88 = scmp.ne.s32.totalorder %s77, %s78
    %p89 = scmp.eq.s32.totalorder %s16, 0
    %p90 = por %p88, %p89
    %p91 = scmp.ne.s32.totalorder %s77, %s78
    %p92 = scmp.eq.s32.totalorder %s17, 3
    %p93 = por %p91, %p92
    %p95 = scmp.ne.s32.totalorder %s78, %s94
    %p96 = scmp.eq.s32.totalorder %s17, 0
    %p97 = por %p95, %p96
    %s98 = smul.u32 %s19, 4
    %s99 = sadd.s32 %s98, 5
    %s100 = smul.u32 %s33, 4
    %s101 = sadd.s32 %s100, 5
    %s102 = ssub.s32 %s18, %s37
    %s103 = ssub.s32 %s99, %s101
    %s104 = sor.u32 %s102, %s103
    %p105 = scmp.eq.s32.totalorder %s104, 0
    %s107 = sadd.s32 %s106, 1
    %s108 = scalar_select %p105, %s106, %s107
    %p111 = pneg %p105
    %p112 = scmp.eq.s32.totalorder %s11, 3
    %p113 = por %p111, %p112
    %p114 = scmp.ne.s32.totalorder %s106, %s109
    %p115 = scmp.eq.s32.totalorder %s11, 0
    %p116 = por %p114, %p115
    %p117 = scmp.ne.s32.totalorder %s106, %s109
    %p118 = scmp.eq.s32.totalorder %s16, 3
    %p119 = por %p117, %p118
    %p120 = scmp.ne.s32.totalorder %s109, %s110
    %p121 = scmp.eq.s32.totalorder %s16, 0
    %p122 = por %p120, %p121
    %p123 = scmp.ne.s32.totalorder %s109, %s110
    %p124 = scmp.eq.s32.totalorder %s17, 3
    %p125 = por %p123, %p124
    %p127 = scmp.ne.s32.totalorder %s110, %s126
    %p128 = scmp.eq.s32.totalorder %s17, 0
    %p129 = por %p127, %p128
    %s130 = ssub.s32 %s20, %s29
    %p131 = scmp.eq.s32.totalorder %s130, 0
    %s133 = sadd.s32 %s132, 1
    %s134 = scalar_select %p131, %s132, %s133
    %p137 = pneg %p131
    %p138 = scmp.eq.s32.totalorder %s11, 3
    %p139 = por %p137, %p138
    %p140 = scmp.ne.s32.totalorder %s132, %s135
    %p141 = scmp.eq.s32.totalorder %s11, 0
    %p142 = por %p140, %p141
    %p143 = scmp.ne.s32.totalorder %s132, %s135
    %p144 = scmp.eq.s32.totalorder %s16, 3
    %p145 = por %p143, %p144
    %p146 = scmp.ne.s32.totalorder %s135, %s136
    %p147 = scmp.eq.s32.totalorder %s16, 0
    %p148 = por %p146, %p147
    %p149 = scmp.ne.s32.totalorder %s135, %s136
    %p150 = scmp.eq.s32.totalorder %s17, 3
    %p151 = por %p149, %p150
    %p153 = scmp.ne.s32.totalorder %s136, %s152
    %p154 = scmp.eq.s32.totalorder %s17, 0
    %p155 = por %p153, %p154
    %s156 = ssub.s32 %s20, %s29
    %p157 = scmp.eq.s32.totalorder %s156, 0
    %s159 = sadd.s32 %s158, 1
    %s160 = scalar_select %p157, %s158, %s159
    %p163 = pneg %p157
    %p164 = scmp.eq.s32.totalorder %s11, 3
    %p165 = por %p163, %p164
    %p166 = scmp.ne.s32.totalorder %s158, %s161
    %p167 = scmp.eq.s32.totalorder %s11, 0
    %p168 = por %p166, %p167
    %p169 = scmp.ne.s32.totalorder %s158, %s161
    %p170 = scmp.eq.s32.totalorder %s16, 3
    %p171 = por %p169, %p170
    %p172 = scmp.ne.s32.totalorder %s161, %s162
    %p173 = scmp.eq.s32.totalorder %s16, 0
    %p174 = por %p172, %p173
    %p175 = scmp.ne.s32.totalorder %s161, %s162
    %p176 = scmp.eq.s32.totalorder %s17, 3
    %p177 = por %p175, %p176
    %p179 = scmp.ne.s32.totalorder %s162, %s178
    %p180 = scmp.eq.s32.totalorder %s17, 0
    %p181 = por %p179, %p180
    %s182 = ssub.s32 %s18, %s37
    %s183 = ssub.s32 %s19, %s33
    %s184 = sor.u32 %s182, %s183
    %s185 = ssub.s32 %s20, %s29
    %s186 = sor.u32 %s184, %s185
    %p187 = scmp.eq.s32.totalorder %s186, 0
    %s189 = sadd.s32 %s188, 1
    %s190 = scalar_select %p187, %s188, %s189
    %p193 = pneg %p187
    %p194 = scmp.eq.s32.totalorder %s11, 3
    %p195 = por %p193, %p194
    %p196 = scmp.ne.s32.totalorder %s188, %s191
    %p197 = scmp.eq.s32.totalorder %s11, 0
    %p198 = por %p196, %p197
    %p199 = scmp.ne.s32.totalorder %s188, %s191
    %p200 = scmp.eq.s32.totalorder %s16, 3
    %p201 = por %p199, %p200
    %p202 = scmp.ne.s32.totalorder %s191, %s192
    %p203 = scmp.eq.s32.totalorder %s16, 0
    %p204 = por %p202, %p203
    %p205 = scmp.ne.s32.totalorder %s191, %s192
    %p206 = scmp.eq.s32.totalorder %s17, 3
    %p207 = por %p205, %p206
    %p209 = scmp.ne.s32.totalorder %s192, %s208
    %p210 = scmp.eq.s32.totalorder %s17, 0
    %p211 = por %p209, %p210
    %p212 = scmp.le.s32.totalorder 1, %s11
    %p213 = scmp.lt.s32.totalorder %s11, 5
    %p214 = pnand %p212, %p213
    %p215 = pneg %p214
    // Predicated region
    $region9: #{_lambda_.1} parent=5 // pred_check
      _
    $region10: #{_lambda_.1} parent=5 // pred_check_branch
      %217 = sbr.rel (%p214) target = $region12
    $region11: #{_lambda_.1} parent=5 // pred_region
      %s218 = ssub.s32 %s11, 1
      // Predicated region
      $region13: #{_lambda_.1} parent=11 // pred_check
        %p219 = pneg %p148
      $region14: #{_lambda_.1} parent=11 // pred_check_branch
        %221 = sbr.rel (%p219) target = $region16
      $region15: #{_lambda_.1} parent=11 // pred_region
        %p222 = scmp.lt.s32.totalorder %s23, 0
        %s223 = scalar_select %p222, %s23, 0
        %s224 = smul.addr %s223, 4
        %s225 = scalar_lea.vmem %s3, %s224
      $region16: #{_lambda_.1} parent=11 // pred_fallthru
        _
      // Predicated region
      $region17: #{_lambda_.1} parent=11 // pred_check
        %p226 = pneg %p174
      $region18: #{_lambda_.1} parent=11 // pred_check_branch
        %228 = sbr.rel (%p226) target = $region20
      $region19: #{_lambda_.1} parent=11 // pred_region
        %p229 = scmp.lt.s32.totalorder %s23, 0
        %s230 = scalar_select %p229, %s23, 0
        %s231 = scalar_lea.vmem %s4, %s230
      $region20: #{_lambda_.1} parent=11 // pred_fallthru
        _
    $region12: #{_lambda_.1} parent=5 // pred_fallthru
      _
    %p232 = scmp.lt.s32.totalorder %s11, 4
    // Predicated region
    $region21: #{_lambda_.1} parent=5 // pred_check
      %p233 = pneg %p232
    $region22: #{_lambda_.1} parent=5 // pred_check_branch
      %235 = sbr.rel (%p233) target = $region24
    $region23: #{_lambda_.1} parent=5 // pred_region
      // Predicated region
      $region25: #{_lambda_.1} parent=23 // pred_check
        %p236 = pneg %p52
      $region26: #{_lambda_.1} parent=23 // pred_check_branch
        %238 = sbr.rel (%p236) target = $region28
      $region27: #{_lambda_.1} parent=23 // pred_region
        %s239 = smul.u32 4, %s19
        %p240 = scmp.lt.s32.totalorder %s18, 0
        %s241 = scalar_select %p240, %s18, 0
        %p242 = scmp.lt.s32.totalorder %s239, 19
        %s243 = scalar_select %p242, %s239, 19
        %s244 = smul.addr %s243, 3
        %s245 = smul.addr %s241, 60
        %s246 = sadd.s32 %s244, %s245
        %s247 = smul.addr %s246, 8
        %s248 = scalar_lea.vmem %s0, %s247
        %s249 = smul.u32 4, %s19
      $region28: #{_lambda_.1} parent=23 // pred_fallthru
        _
      // Predicated region
      $region29: #{_lambda_.1} parent=23 // pred_check
        %p250 = pneg %p84
      $region30: #{_lambda_.1} parent=23 // pred_check_branch
        %252 = sbr.rel (%p250) target = $region32
      $region31: #{_lambda_.1} parent=23 // pred_region
        %s253 = smul.u32 %s19, 4
        %s254 = sadd.s32 %s253, 4
        %p255 = scmp.lt.s32.totalorder %s18, 0
        %s256 = scalar_select %p255, %s18, 0
        %p257 = scmp.lt.s32.totalorder %s254, 19
        %s258 = scalar_select %p257, %s254, 19
        %s259 = smul.addr %s258, 3
        %s260 = smul.addr %s256, 60
        %s261 = sadd.s32 %s259, %s260
        %s262 = smul.addr %s261, 8
        %s263 = scalar_lea.vmem %s1, %s262
        %s264 = smul.u32 %s19, 4
        %s265 = sadd.s32 %s264, 4
      $region32: #{_lambda_.1} parent=23 // pred_fallthru
        _
      // Predicated region
      $region33: #{_lambda_.1} parent=23 // pred_check
        %p266 = pneg %p116
      $region34: #{_lambda_.1} parent=23 // pred_check_branch
        %268 = sbr.rel (%p266) target = $region36
      $region35: #{_lambda_.1} parent=23 // pred_region
        %s269 = smul.u32 %s19, 4
        %s270 = sadd.s32 %s269, 5
        %p271 = scmp.lt.s32.totalorder %s18, 0
        %s272 = scalar_select %p271, %s18, 0
        %p273 = scmp.lt.s32.totalorder %s270, 19
        %s274 = scalar_select %p273, %s270, 19
        %s275 = smul.addr %s274, 3
        %s276 = smul.addr %s272, 60
        %s277 = sadd.s32 %s275, %s276
        %s278 = smul.addr %s277, 8
        %s279 = scalar_lea.vmem %s2, %s278
        %s280 = smul.u32 %s19, 4
        %s281 = sadd.s32 %s280, 5
      $region36: #{_lambda_.1} parent=23 // pred_fallthru
        _
    $region24: #{_lambda_.1} parent=5 // pred_fallthru
      _
    %p282 = scmp.le.s32.totalorder 1, %s11
    %p283 = scmp.lt.s32.totalorder %s11, 5
    %p284 = pnand %p282, %p283
    %p285 = pneg %p284
    // Predicated region
    $region37: #{_lambda_.1} parent=5 // pred_check
      _
    $region38: #{_lambda_.1} parent=5 // pred_check_branch
      %287 = sbr.rel (%p284) target = $region40
    $region39: #{_lambda_.1} parent=5 // pred_region
      %s288 = ssub.s32 %s11, 1
      %s289 = smul.u32 4, %s22
      %p290 = scmp.lt.s32.totalorder %s21, 0
      %s291 = scalar_select %p290, %s21, 0
      %p292 = scmp.lt.s32.totalorder %s289, 19
      %s293 = scalar_select %p292, %s289, 19
      %s294 = smul.addr %s293, 3
      %s295 = smul.addr %s291, 60
      %s296 = sadd.s32 %s294, %s295
      %s297 = smul.addr %s296, 8
      %s298 = scalar_lea.vmem %s0, %s297
      %p299 = pneg %p58
      %p300 = pneg %p55
      %s301 = smul.u32 %s22, 4
      %s302 = sadd.s32 %s301, 4
      %p303 = scmp.lt.s32.totalorder %s21, 0
      %s304 = scalar_select %p303, %s21, 0
      %p305 = scmp.lt.s32.totalorder %s302, 19
      %s306 = scalar_select %p305, %s302, 19
      %s307 = smul.addr %s306, 3
      %s308 = smul.addr %s304, 60
      %s309 = sadd.s32 %s307, %s308
      %s310 = smul.addr %s309, 8
      %s311 = scalar_lea.vmem %s1, %s310
      %p312 = pneg %p90
      %p313 = pneg %p87
      %s314 = smul.u32 %s22, 4
      %s315 = sadd.s32 %s314, 5
      %p316 = scmp.lt.s32.totalorder %s21, 0
      %s317 = scalar_select %p316, %s21, 0
      %p318 = scmp.lt.s32.totalorder %s315, 19
      %s319 = scalar_select %p318, %s315, 19
      %s320 = smul.addr %s319, 3
      %s321 = smul.addr %s317, 60
      %s322 = sadd.s32 %s320, %s321
      %s323 = smul.addr %s322, 8
      %s324 = scalar_lea.vmem %s2, %s323
      %p325 = pneg %p122
      %p326 = pneg %p119
      %p327 = scmp.lt.s32.totalorder %s23, 0
      %s328 = scalar_select %p327, %s23, 0
      %s329 = smul.addr %s328, 4
      %s330 = scalar_lea.vmem %s3, %s329
      %p331 = pneg %p148
      %p332 = pneg %p145
      %p333 = scmp.lt.s32.totalorder %s23, 0
      %s334 = scalar_select %p333, %s23, 0
      %s335 = scalar_lea.vmem %s4, %s334
      %p336 = pneg %p174
      %p337 = pneg %p171
      %p338 = pneg %p204
      %p339 = pneg %p201
      %s340 = smul.u32 4, %s22
      %p341 = scmp.lt.s32.totalorder %s21, 0
      %s342 = scalar_select %p341, %s21, 0
      %p343 = scmp.lt.s32.totalorder %s340, 15
      %s344 = scalar_select %p343, %s340, 15
      %p345 = scmp.lt.s32.totalorder %s23, 0
      %s346 = scalar_select %p345, %s23, 0
      %s347 = smul.addr %s344, 2
      %s348 = sadd.s32 %s346, %s347
      %s349 = smul.addr %s342, 32
      %s350 = sadd.s32 %s348, %s349
      %s351 = smul.addr %s350, 8
      %s352 = scalar_lea.vmem %s5, %s351
      %s353 = smul.u32 4, %s22
      %p354 = scmp.lt.s32.totalorder %s21, 0
      %s355 = scalar_select %p354, %s21, 0
      %p356 = scmp.lt.s32.totalorder %s353, 19
      %s357 = scalar_select %p356, %s353, 19
      %s358 = smul.addr %s357, 3
      %s359 = smul.addr %s355, 60
      %s360 = sadd.s32 %s358, %s359
      %s361 = smul.addr %s360, 8
      %s362 = scalar_lea.vmem %s0, %s361
      %s363 = smul.u32 4, %s22
      %s364 = smul.u32 %s22, 4
      %s365 = sadd.s32 %s364, 4
      %p366 = scmp.lt.s32.totalorder %s21, 0
      %s367 = scalar_select %p366, %s21, 0
      %p368 = scmp.lt.s32.totalorder %s365, 19
      %s369 = scalar_select %p368, %s365, 19
      %s370 = smul.addr %s369, 3
      %s371 = smul.addr %s367, 60
      %s372 = sadd.s32 %s370, %s371
      %s373 = smul.addr %s372, 8
      %s374 = scalar_lea.vmem %s1, %s373
      %s375 = smul.u32 %s22, 4
      %s376 = sadd.s32 %s375, 4
      %s377 = smul.u32 %s22, 4
      %s378 = sadd.s32 %s377, 5
      %p379 = scmp.lt.s32.totalorder %s21, 0
      %s380 = scalar_select %p379, %s21, 0
      %p381 = scmp.lt.s32.totalorder %s378, 19
      %s382 = scalar_select %p381, %s378, 19
      %s383 = smul.addr %s382, 3
      %s384 = smul.addr %s380, 60
      %s385 = sadd.s32 %s383, %s384
      %s386 = smul.addr %s385, 8
      %s387 = scalar_lea.vmem %s2, %s386
      %s388 = smul.u32 %s22, 4
      %s389 = sadd.s32 %s388, 5
      %p390 = scmp.lt.s32.totalorder %s23, 0
      %s391 = scalar_select %p390, %s23, 0
      %s392 = smul.addr %s391, 4
      %s393 = scalar_lea.vmem %s3, %s392
      %p394 = scmp.lt.s32.totalorder %s23, 0
      %s395 = scalar_select %p394, %s23, 0
      %s396 = scalar_lea.vmem %s4, %s395
      %s397 = smul.u32 4, %s22
      %p398 = scmp.lt.s32.totalorder %s21, 0
      %s399 = scalar_select %p398, %s21, 0
      %p400 = scmp.lt.s32.totalorder %s397, 15
      %s401 = scalar_select %p400, %s397, 15
      %p402 = scmp.lt.s32.totalorder %s23, 0
      %s403 = scalar_select %p402, %s23, 0
      %s404 = smul.addr %s401, 2
      %s405 = sadd.s32 %s403, %s404
      %s406 = smul.addr %s399, 32
      %s407 = sadd.s32 %s405, %s406
      %s408 = smul.addr %s407, 8
      %s409 = scalar_lea.vmem %s5, %s408
      %s410 = smul.u32 4, %s22
      %v412 = vld [vmem:[%s362] sm:$0xff]
      %v413 = vld [vmem:[%s362 + $0x8] sm:$0xff]
      %v414 = vld [vmem:[%s362 + $0x10] sm:$0x3]
      %v415 = vld [vmem:[%s362 + $0x18] sm:$0xff]
      %v416 = vld [vmem:[%s362 + $0x20] sm:$0xff]
      %v417 = vld [vmem:[%s362 + $0x28] sm:$0x3]
      %v418 = vld [vmem:[%s362 + $0x30] sm:$0xff]
      %v419 = vld [vmem:[%s362 + $0x38] sm:$0xff]
      %v420 = vld [vmem:[%s362 + $0x40] sm:$0x3]
      %v421 = vld [vmem:[%s362 + $0x48] sm:$0xff]
      %v422 = vld [vmem:[%s362 + $0x50] sm:$0xff]
      %v423 = vld [vmem:[%s362 + $0x58] sm:$0x3]
      %v424 = vld [vmem:[%s374] sm:$0xff]
      %v425 = vld [vmem:[%s374 + $0x8] sm:$0xff]
      %v426 = vld [vmem:[%s374 + $0x10] sm:$0x3]
      %v427 = vld [vmem:[%s387] sm:$0xff]
      %v428 = vld [vmem:[%s387 + $0x8] sm:$0xff]
      %v429 = vld [vmem:[%s387 + $0x10] sm:$0x3]
      %v430 = vpack.c.bf16 %v413, %v412
      %v431 = vpack.c.bf16 %v414, %v414
      %v432 = vpack.c.bf16 %v416, %v415
      %v433 = vpack.c.bf16 %v417, %v417
      %v434 = vpack.c.bf16 %v419, %v418
      %v435 = vpack.c.bf16 %v420, %v420
      %v436 = vpack.c.bf16 %v422, %v421
      %v437 = vpack.c.bf16 %v423, %v423
      %v438 = vpack.c.bf16 %v425, %v424
      %v439 = vpack.c.bf16 %v426, %v426
      %v440 = vpack.c.bf16 %v428, %v427
      %v441 = vpack.c.bf16 %v429, %v429
      %vm442 = vsmask.f32 7424
      %v444 = vshrl.u32 %v430, 16
      %v446 = vshll.u32 %v430, 16
      %v448 = vrot.slane %v446, 1
      %v449 = vor.u32 %v444, %v448
      %v451 = vshll.u32 %v431, 16
      %v453 = vrot.slane %v451, 1
      %v454 = vsel %vm442, %v449, %v453
      %v456 = vshrl.u32 %v432, 16
      %v458 = vshll.u32 %v432, 16
      %v460 = vrot.slane %v458, 1
      %v461 = vor.u32 %v456, %v460
      %v463 = vshll.u32 %v433, 16
      %v465 = vrot.slane %v463, 1
      %v466 = vsel %vm442, %v461, %v465
      %v468 = vshrl.u32 %v434, 16
      %v470 = vshll.u32 %v434, 16
      %v472 = vrot.slane %v470, 1
      %v473 = vor.u32 %v468, %v472
      %v475 = vshll.u32 %v435, 16
      %v477 = vrot.slane %v475, 1
      %v478 = vsel %vm442, %v473, %v477
      %v480 = vshrl.u32 %v436, 16
      %v482 = vshll.u32 %v436, 16
      %v484 = vrot.slane %v482, 1
      %v485 = vor.u32 %v480, %v484
      %v487 = vshll.u32 %v437, 16
      %v489 = vrot.slane %v487, 1
      %v490 = vsel %vm442, %v485, %v489
      %491 = vrot.lane.b32.xlu0 %v454, 6
      %v492 = vpop.permute.xlu0 %491
      %493 = vrot.lane.b32.xlu0 %v466, 6
      %v494 = vpop.permute.xlu0 %493
      %495 = vrot.lane.b32.xlu0 %v478, 6
      %v496 = vpop.permute.xlu0 %495
      %497 = vrot.lane.b32.xlu0 %v490, 6
      %v498 = vpop.permute.xlu0 %497
      %vm507 = vcmask 1046528
      %v508 = vrot.slane %v430, 1
      %v509 = vrot.slane %v431, 1
      %v510 = vsel %vm507, %v508, %v509
      %v511 = vrot.slane %v432, 1
      %v512 = vrot.slane %v433, 1
      %v513 = vsel %vm507, %v511, %v512
      %v514 = vrot.slane %v434, 1
      %v515 = vrot.slane %v435, 1
      %v516 = vsel %vm507, %v514, %v515
      %v517 = vrot.slane %v436, 1
      %v518 = vrot.slane %v437, 1
      %v519 = vsel %vm507, %v517, %v518
      %520 = vrot.lane.b32.xlu0 %v510, 12
      %v521 = vpop.permute.xlu0 %520
      %522 = vrot.lane.b32.xlu0 %v513, 12
      %v523 = vpop.permute.xlu0 %522
      %524 = vrot.lane.b32.xlu0 %v516, 12
      %v525 = vpop.permute.xlu0 %524
      %526 = vrot.lane.b32.xlu0 %v519, 12
      %v527 = vpop.permute.xlu0 %526
      %529 = vrot.lane.b32.xlu0 %v432, 18
      %v530 = vpop.permute.xlu0 %529
      %531 = vrot.lane.b32.xlu0 %v434, 18
      %v532 = vpop.permute.xlu0 %531
      %533 = vrot.lane.b32.xlu0 %v436, 18
      %v534 = vpop.permute.xlu0 %533
      %535 = vrot.lane.b32.xlu0 %v438, 18
      %v536 = vpop.permute.xlu0 %535
      %v538 = vshrl.u32 %v438, 16
      %v540 = vshll.u32 %v438, 16
      %v542 = vrot.slane %v540, 1
      %v543 = vor.u32 %v538, %v542
      %v545 = vshll.u32 %v439, 16
      %v547 = vrot.slane %v545, 1
      %v548 = vsel %vm442, %v543, %v547
      %549 = vrot.lane.b32.xlu0 %v466, 24
      %v550 = vpop.permute.xlu0 %549
      %551 = vrot.lane.b32.xlu0 %v478, 24
      %v552 = vpop.permute.xlu0 %551
      %553 = vrot.lane.b32.xlu0 %v490, 24
      %v554 = vpop.permute.xlu0 %553
      %555 = vrot.lane.b32.xlu0 %v548, 24
      %v556 = vpop.permute.xlu0 %555
      %v558 = vrot.slane %v438, 1
      %v559 = vrot.slane %v439, 1
      %v560 = vsel %vm507, %v558, %v559
      %561 = vrot.lane.b32.xlu0 %v513, 30
      %v562 = vpop.permute.xlu0 %561
      %563 = vrot.lane.b32.xlu0 %v516, 30
      %v564 = vpop.permute.xlu0 %563
      %565 = vrot.lane.b32.xlu0 %v519, 30
      %v566 = vpop.permute.xlu0 %565
      %567 = vrot.lane.b32.xlu0 %v560, 30
      %v568 = vpop.permute.xlu0 %567
      %570 = vrot.lane.b32.xlu0 %v434, 36
      %v571 = vpop.permute.xlu0 %570
      %572 = vrot.lane.b32.xlu0 %v436, 36
      %v573 = vpop.permute.xlu0 %572
      %574 = vrot.lane.b32.xlu0 %v438, 36
      %v575 = vpop.permute.xlu0 %574
      %576 = vrot.lane.b32.xlu0 %v440, 36
      %v577 = vpop.permute.xlu0 %576
      %v579 = vshrl.u32 %v440, 16
      %v581 = vshll.u32 %v440, 16
      %v583 = vrot.slane %v581, 1
      %v584 = vor.u32 %v579, %v583
      %v586 = vshll.u32 %v441, 16
      %v588 = vrot.slane %v586, 1
      %v589 = vsel %vm442, %v584, %v588
      %590 = vrot.lane.b32.xlu0 %v478, 42
      %v591 = vpop.permute.xlu0 %590
      %592 = vrot.lane.b32.xlu0 %v490, 42
      %v593 = vpop.permute.xlu0 %592
      %594 = vrot.lane.b32.xlu0 %v548, 42
      %v595 = vpop.permute.xlu0 %594
      %596 = vrot.lane.b32.xlu0 %v589, 42
      %v597 = vpop.permute.xlu0 %596
      %v599 = vrot.slane %v440, 1
      %v600 = vrot.slane %v441, 1
      %v601 = vsel %vm507, %v599, %v600
      %602 = vrot.lane.b32.xlu0 %v516, 48
      %v603 = vpop.permute.xlu0 %602
      %604 = vrot.lane.b32.xlu0 %v519, 48
      %v605 = vpop.permute.xlu0 %604
      %606 = vrot.lane.b32.xlu0 %v560, 48
      %v607 = vpop.permute.xlu0 %606
      %608 = vrot.lane.b32.xlu0 %v601, 48
      %v609 = vpop.permute.xlu0 %608
      %vm610 = vcmask 48128
      %v612 = vsel %vm610, %v430, %v492
      %v614 = vsel %vm610, %v432, %v494
      %v616 = vsel %vm610, %v434, %v496
      %v618 = vsel %vm610, %v436, %v498
      %vm619 = vcmask 97280
      %v621 = vsel %vm619, %v612, %v521
      %v623 = vsel %vm619, %v614, %v523
      %v625 = vsel %vm619, %v616, %v525
      %v627 = vsel %vm619, %v618, %v527
      %vm628 = vcmask 146432
      %v630 = vsel %vm628, %v621, %v530
      %v632 = vsel %vm628, %v623, %v532
      %v634 = vsel %vm628, %v625, %v534
      %v636 = vsel %vm628, %v627, %v536
      %vm637 = vcmask 195584
      %v639 = vsel %vm637, %v630, %v550
      %v641 = vsel %vm637, %v632, %v552
      %v643 = vsel %vm637, %v634, %v554
      %v645 = vsel %vm637, %v636, %v556
      %vm646 = vcmask 244736
      %v648 = vsel %vm646, %v639, %v562
      %v650 = vsel %vm646, %v641, %v564
      %v652 = vsel %vm646, %v643, %v566
      %v654 = vsel %vm646, %v645, %v568
      %vm655 = vcmask 293888
      %v657 = vsel %vm655, %v648, %v571
      %v659 = vsel %vm655, %v650, %v573
      %v661 = vsel %vm655, %v652, %v575
      %v663 = vsel %vm655, %v654, %v577
      %vm664 = vcmask 343040
      %v666 = vsel %vm664, %v657, %v591
      %v668 = vsel %vm664, %v659, %v593
      %v670 = vsel %vm664, %v661, %v595
      %v672 = vsel %vm664, %v663, %v597
      %vm673 = vcmask 392192
      %v675 = vsel %vm673, %v666, %v603
      %v677 = vsel %vm673, %v668, %v605
      %v679 = vsel %vm673, %v670, %v607
      %v681 = vsel %vm673, %v672, %v609
      %v682 = vld [vmem:[%s393] sm:$0xf]
      %v683 = vld [vmem:[%s393 + $0x4] sm:$0xf]
      %v684 = vld [vmem:[%s393 + $0x8] sm:$0xf]
      %v685 = vld [vmem:[%s393 + $0xc] sm:$0xf]
      %v686 = vld [vmem:[%s393 + $0x10] sm:$0xf]
      %v687 = vld [vmem:[%s393 + $0x14] sm:$0xf]
      %v688 = vld [vmem:[%s393 + $0x18] sm:$0x7]
      %v689 = vld [vmem:[%s396] sm:$0x1]
      %v691 = vlaneseq
      %v692 = vshrl.u32 %v691, 7
      %v693 = vsub.s32 0, %v692
      %v694 = vrot.slane %v689, %v693
      %v703 = vunpack.c.l.b16 %v682
      %v704 = vunpack.c.l.b16 %v683
      %v705 = vunpack.c.l.b16 %v684
      %v706 = vunpack.c.l.b16 %v685
      %v707 = vunpack.c.l.b16 %v686
      %v708 = vunpack.c.l.b16 %v687
      %v709 = vunpack.c.l.b16 %v688
      %v710 = vpack.c.b16 %v704, %v703
      %v711 = vpack.c.b16 %v706, %v705
      %v712 = vpack.c.b16 %v708, %v707
      %v713 = vpack.c.b16 %v709, %v709
      %vm717 = vcmask 441344
      %v718 = vsel %vm717, %v675, 0
      %v720 = vsel %vm717, %v677, 0
      %v722 = vsel %vm717, %v679, 0
      %v724 = vsel %vm717, %v681, 0
      %vm726 = vcmask 1042432
      %v728 = vsel %vm726, %v713, 0
      %730 = vmatprep.subr.bf16.mxu0 0
      %731 = vmatpush1.bf16.msra.mxu0 %v710
      %732 = vmatprep.subr.bf16.mxu0 0
      %733 = vmatpush1.bf16.msra.mxu0 %v711
      %734 = vmatprep.subr.bf16.mxu0 0
      %735 = vmatpush1.bf16.msra.mxu0 %v712
      %736 = vmatprep.subr.bf16.mxu0 0
      %737 = vmatpush1.bf16.msra.mxu0 %v728
      %738 = vmatprep.subr.bf16.mxu0 0
      %739 = vmatpush1.bf16.msra.mxu0 0
      %740 = vmatprep.subr.bf16.mxu0 0
      %741 = vmatpush1.bf16.msra.mxu0 0
      %742 = vmatprep.subr.bf16.mxu0 0
      %743 = vmatpush1.bf16.msra.mxu0 0
      %744 = vmatprep.subr.bf16.mxu0 0
      %745 = vmatpush1.bf16.msra.mxu0 0
      %746 = vmatprep.subr.bf16.mxu0 0
      %747 = vmatpush1.bf16.msra.mxu0 0
      %748 = vmatprep.subr.bf16.mxu0 0
      %749 = vmatpush1.bf16.msra.mxu0 0
      %750 = vmatprep.subr.bf16.mxu0 0
      %751 = vmatpush1.bf16.msra.mxu0 0
      %752 = vmatprep.subr.bf16.mxu0 0
      %753 = vmatpush1.bf16.msra.mxu0 0
      %754 = vmatprep.subr.bf16.mxu0 0
      %755 = vmatpush1.bf16.msra.mxu0 0
      %756 = vmatprep.subr.bf16.mxu0 0
      %757 = vmatpush1.bf16.msra.mxu0 0
      %758 = vmatprep.subr.bf16.mxu0 0
      %759 = vmatpush1.bf16.msra.mxu0 0
      %760 = vmatprep.subr.bf16.mxu0 0
      %761 = vmatpush1.bf16.msra.mxu0 0
      %762 = vmatprep.mubr.bf16.mxu0 0
      %763 = vmatmul.mubr.bf16.gmra.mrb[0].mxu0 %v718
      %v764 = vpop.f32.mrb[0].mxu0
      %v765 = vadd.f32 %v694, %v764
      %v766 = vpop.f32.mrb[0].mxu0
      %v767 = vpop.f32.mrb[0].mxu0
      %v768 = vadd.f32 %v694, %v767
      %v769 = vpop.f32.mrb[0].mxu0
      %770 = vmatprep.mubr.bf16.mxu0 0
      %771 = vmatmul.mubr.bf16.gmra.mrb[0].mxu0 %v720
      %v772 = vpop.f32.mrb[0].mxu0
      %v773 = vadd.f32 %v694, %v772
      %v774 = vpop.f32.mrb[0].mxu0
      %v775 = vpop.f32.mrb[0].mxu0
      %v776 = vadd.f32 %v694, %v775
      %v777 = vpop.f32.mrb[0].mxu0
      %778 = vmatprep.mubr.bf16.mxu0 0
      %779 = vmatmul.mubr.bf16.gmra.mrb[0].mxu0 %v722
      %v780 = vpop.f32.mrb[0].mxu0
      %v781 = vadd.f32 %v694, %v780
      %v782 = vpop.f32.mrb[0].mxu0
      %v783 = vpop.f32.mrb[0].mxu0
      %v784 = vadd.f32 %v694, %v783
      %v785 = vpop.f32.mrb[0].mxu0
      %786 = vmatprep.mubr.bf16.mxu0 0
      %787 = vmatmul.mubr.bf16.gmra.mrb[0].mxu0 %v724
      %v788 = vpop.f32.mrb[0].mxu0
      %v789 = vadd.f32 %v694, %v788
      %v790 = vpop.f32.mrb[0].mxu0
      %v791 = vpop.f32.mrb[0].mxu0
      %v792 = vadd.f32 %v694, %v791
      %v793 = vpop.f32.mrb[0].mxu0
      %794 = vdwg.mxu0
      %vm795 = vcmp.ge.f32.partialorder %v765, 0.0
      %vm796 = vcmp.ge.f32.partialorder %v768, 0.0
      %vm797 = vcmp.ge.f32.partialorder %v773, 0.0
      %vm798 = vcmp.ge.f32.partialorder %v776, 0.0
      %vm799 = vcmp.ge.f32.partialorder %v781, 0.0
      %vm800 = vcmp.ge.f32.partialorder %v784, 0.0
      %vm801 = vcmp.ge.f32.partialorder %v789, 0.0
      %vm802 = vcmp.ge.f32.partialorder %v792, 0.0
      %v803 = vmul.f32 %v765, 0.1
      %v804 = vmul.f32 %v768, 0.1
      %v805 = vmul.f32 %v773, 0.1
      %v806 = vmul.f32 %v776, 0.1
      %v807 = vmul.f32 %v781, 0.1
      %v808 = vmul.f32 %v784, 0.1
      %v809 = vmul.f32 %v789, 0.1
      %v810 = vmul.f32 %v792, 0.1
      %v811 = vsel %vm795, %v765, %v803
      %v812 = vsel %vm796, %v768, %v804
      %v813 = vsel %vm797, %v773, %v805
      %v814 = vsel %vm798, %v776, %v806
      %v815 = vsel %vm799, %v781, %v807
      %v816 = vsel %vm800, %v784, %v808
      %v817 = vsel %vm801, %v789, %v809
      %v818 = vsel %vm802, %v792, %v810
      %vm819 = vcmask 64512
      %820 = vst.msk [vmem:[%s409] sm:$0xff] %vm819, %v811
      %821 = vst.msk [vmem:[%s409 + $0x8] sm:$0xff] %vm819, %v812
      %822 = vst.msk [vmem:[%s409 + $0x10] sm:$0xff] %vm819, %v813
      %823 = vst.msk [vmem:[%s409 + $0x18] sm:$0xff] %vm819, %v814
      %824 = vst.msk [vmem:[%s409 + $0x20] sm:$0xff] %vm819, %v815
      %825 = vst.msk [vmem:[%s409 + $0x28] sm:$0xff] %vm819, %v816
      %826 = vst.msk [vmem:[%s409 + $0x30] sm:$0xff] %vm819, %v817
      %827 = vst.msk [vmem:[%s409 + $0x38] sm:$0xff] %vm819, %v818
      %s828 = smul.u32 4, %s22
      %p829 = scmp.lt.s32.totalorder %s21, 0
      %s830 = scalar_select %p829, %s21, 0
      %p831 = scmp.lt.s32.totalorder %s828, 15
      %s832 = scalar_select %p831, %s828, 15
      %p833 = scmp.lt.s32.totalorder %s23, 0
      %s834 = scalar_select %p833, %s23, 0
      %s835 = smul.addr %s832, 2
      %s836 = sadd.s32 %s834, %s835
      %s837 = smul.addr %s830, 32
      %s838 = sadd.s32 %s836, %s837
      %s839 = smul.addr %s838, 8
      %s840 = scalar_lea.vmem %s5, %s839
      // Predicated region
      $region41: #{_lambda_.1} parent=39 // pred_check
        %p841 = pneg %p201
      $region42: #{_lambda_.1} parent=39 // pred_check_branch
        %843 = sbr.rel (%p841) target = $region44
      $region43: #{_lambda_.1} parent=39 // pred_region
        %s844 = smul.u32 4, %s22
      $region44: #{_lambda_.1} parent=39 // pred_fallthru
        _
    $region40: #{_lambda_.1} parent=5 // pred_fallthru
      _
    %p845 = scmp.le.s32.totalorder 2, %s11
    // Predicated region
    $region45: #{_lambda_.1} parent=5 // pred_check
      %p846 = pneg %p845
    $region46: #{_lambda_.1} parent=5 // pred_check_branch
      %848 = sbr.rel (%p846) target = $region48
    $region47: #{_lambda_.1} parent=5 // pred_region
      %s849 = ssub.s32 %s11, 2
      // Predicated region
      $region49: #{_lambda_.1} parent=47 // pred_check
        %p850 = pneg %p207
      $region50: #{_lambda_.1} parent=47 // pred_check_branch
        %852 = sbr.rel (%p850) target = $region52
      $region51: #{_lambda_.1} parent=47 // pred_region
        %s853 = smul.u32 4, %s25
        %p854 = scmp.lt.s32.totalorder %s24, 0
        %s855 = scalar_select %p854, %s24, 0
        %p856 = scmp.lt.s32.totalorder %s853, 15
        %s857 = scalar_select %p856, %s853, 15
        %p858 = scmp.lt.s32.totalorder %s26, 0
        %s859 = scalar_select %p858, %s26, 0
        %s860 = smul.addr %s857, 2
        %s861 = sadd.s32 %s859, %s860
        %s862 = smul.addr %s855, 32
        %s863 = sadd.s32 %s861, %s862
        %s864 = smul.addr %s863, 8
        %s865 = scalar_lea.vmem %s5, %s864
      $region52: #{_lambda_.1} parent=47 // pred_fallthru
        _
    $region48: #{_lambda_.1} parent=5 // pred_fallthru
      _
  $region6: #{_lambda_.1} parent=0 // loop_footer
    %s15 = sadd.s32 1, %s11
  $region7: #{_lambda_.1} parent=0 // loop_footer_branch
    %10 = sbr.rel target = $region3
  $region8: #{_lambda_.1} parent=0 // loop_exit
    _

</llo_original>
